<compile_context>
chip_gen: v5e
topology: v5e:2x2
jax: 0.10.0
libtpu: 0.0.40
codegen_flags: <defaults>
</compile_context>

<pallas_src>
import functools

import jax
import jax.numpy as jnp
from jax import lax
from jax.experimental import pallas as pl
from jax.experimental.pallas import tpu as pltpu

D_MODEL = 32
DIM_FF = 64
LN_EPS = 1e-5
LANES = 128


def _cdiv(a, b):
    return -(-a // b)


def _round_up(a, b):
    return _cdiv(a, b) * b


def _ffn_layernorm_kernel(x_ref, w1_ref, b1_ref, w2_ref, b2_ref,
                          gamma_ref, beta_ref, mmat_ref, o_ref):
    """One packed row-tile: FFN (relu) + residual + LayerNorm, fully lane-dense."""
    x = x_ref[...]                                           # (tr, 128) f32, P rows/lane-row

    # linear1 + relu  (dropout1 == identity at inference); w1_ref is block-diagonal.
    h = jnp.dot(x, w1_ref[...], preferred_element_type=jnp.float32)
    h = jnp.maximum(h + b1_ref[...], 0.0)                    # (tr, P*dim_ff)

    # linear2  (dropout2 == identity at inference); w2_ref is block-diagonal.
    src = jnp.dot(h, w2_ref[...], preferred_element_type=jnp.float32)
    src = src + b2_ref[...]                                  # (tr, 128)

    # residual + LayerNorm over each 32-lane group (== each logical row).
    # mmat is block-diag(ones(32,32)/32): y @ mmat = per-group mean broadcast in-group.
    y = x + src
    mean = jnp.dot(y, mmat_ref[...], preferred_element_type=jnp.float32,
                   precision=lax.Precision.HIGHEST)
    d = y - mean
    var = jnp.dot(d * d, mmat_ref[...], preferred_element_type=jnp.float32,
                  precision=lax.Precision.HIGHEST)
    out = d * lax.rsqrt(var + LN_EPS) * gamma_ref[...] + beta_ref[...]
    o_ref[...] = out.astype(o_ref.dtype)


def _block_diag(w, p):
    """(k, n) -> (p*k, p*n) block-diagonal with p copies of w on the diagonal."""
    k, n = w.shape
    eye = jnp.eye(p, dtype=w.dtype)
    return (eye[:, None, :, None] * w[None, :, None, :]).reshape(p * k, p * n)


@functools.partial(jax.jit, static_argnames=("tm",))
def baseline_layer(x, w1, b1, w2, b2, gamma, beta, *, tm=1024):
    """x: (batch, seq, d_model) f32.  tm = logical rows per grid step (tuning knob)."""
    batch, seq, d_model = x.shape
    dim_ff = w1.shape[1]
    assert LANES % d_model == 0, "lane-dense packing requires d_model to divide 128"
    P = LANES // d_model                       # logical rows packed per 128-lane row (4)

    rows = batch * seq
    # Packed-row tile size: multiple of 8 sublanes; clamp so tiny inputs don't over-pad.
    tr_cap = max(8, _round_up(max(tm // P, 1), 8))
    r_min = _cdiv(rows, P)
    tr = min(tr_cap, _round_up(r_min, 8))
    grid_n = _cdiv(r_min, tr)                  # remainder handled by zero-padding below
    r_pad = grid_n * tr
    rows_pad = r_pad * P

    x2 = x.reshape(rows, d_model)
    if rows_pad != rows:
        x2 = jnp.pad(x2, ((0, rows_pad - rows), (0, 0)))
    x_packed = x2.reshape(r_pad, LANES)        # free row-major repack: P rows per lane-row

    # Block-diagonal weights / tiled vectors -> packed matmuls are exact per-row linears.
    w1b = _block_diag(w1, P)                                   # (128, P*dim_ff)
    w2b = _block_diag(w2, P)                                   # (P*dim_ff, 128)
    b1t = jnp.tile(b1, P).reshape(1, P * dim_ff)
    b2t = jnp.tile(b2, P).reshape(1, LANES)
    gammat = jnp.tile(gamma, P).reshape(1, LANES)
    betat = jnp.tile(beta, P).reshape(1, LANES)
    mmat = _block_diag(jnp.full((d_model, d_model), 1.0 / d_model, x.dtype), P)  # (128,128)

    out_packed = pl.pallas_call(
        _ffn_layernorm_kernel,
        out_shape=jax.ShapeDtypeStruct((r_pad, LANES), x.dtype),
        grid_spec=pltpu.PrefetchScalarGridSpec(
            num_scalar_prefetch=0,
            grid=(grid_n,),
            in_specs=[
                pl.BlockSpec((tr, LANES), lambda i: (i, 0)),            # x (packed, lane-dense)
                pl.BlockSpec((LANES, P * dim_ff), lambda i: (0, 0)),    # W1 block-diag
                pl.BlockSpec((1, P * dim_ff), lambda i: (0, 0)),        # b1 tiled
                pl.BlockSpec((P * dim_ff, LANES), lambda i: (0, 0)),    # W2 block-diag
                pl.BlockSpec((1, LANES), lambda i: (0, 0)),             # b2 tiled
                pl.BlockSpec((1, LANES), lambda i: (0, 0)),             # gamma tiled
                pl.BlockSpec((1, LANES), lambda i: (0, 0)),             # beta tiled
                pl.BlockSpec((LANES, LANES), lambda i: (0, 0)),         # group-mean matrix
            ],
            out_specs=pl.BlockSpec((tr, LANES), lambda i: (i, 0)),      # lane-dense stores
        ),
        compiler_params=pltpu.CompilerParams(
            dimension_semantics=("parallel",)),                         # shards across TCs (v7x)
    )(x_packed, w1b, b1t, w2b, b2t, gammat, betat, mmat)

    out2 = out_packed.reshape(rows_pad, d_model)[:rows]
    return out2.reshape(batch, seq, d_model)


def _reference(x, w1, b1, w2, b2, gamma, beta):
    h = jnp.maximum(x @ w1 + b1, 0.0)
    src = h @ w2 + b2
    y = x + src
    mean = jnp.mean(y, axis=-1, keepdims=True)
    var = jnp.mean((y - mean) ** 2, axis=-1, keepdims=True)
    return (y - mean) / jnp.sqrt(var + LN_EPS) * gamma + beta


if __name__ == "__main__":
    key = jax.random.PRNGKey(0)
    k_x, k_w1, k_b1, k_w2, k_b2 = jax.random.split(key, 5)

    batch, seq = 2, 8
    x = jax.random.normal(k_x, (batch, seq, D_MODEL), dtype=jnp.float32)

    # Deterministic parameter init (PyTorch Linear stores W as (out, in);
    # here we materialize the already-transposed (in, out) matrices).
    w1 = jax.random.normal(k_w1, (D_MODEL, DIM_FF), dtype=jnp.float32) * 0.05
    b1 = jax.random.normal(k_b1, (DIM_FF,), dtype=jnp.float32) * 0.05
    w2 = jax.random.normal(k_w2, (DIM_FF, D_MODEL), dtype=jnp.float32) * 0.05
    b2 = jax.random.normal(k_b2, (D_MODEL,), dtype=jnp.float32) * 0.05
    gamma = jnp.ones((D_MODEL,), dtype=jnp.float32)   # LayerNorm weight
    beta = jnp.zeros((D_MODEL,), dtype=jnp.float32)   # LayerNorm bias

    # TODO(synk): dropout layers are identity in eval mode; train-mode dropout
    # masks (pltpu.prng_random_bits) are intentionally not implemented.

    out = baseline_layer(x, w1, b1, w2, b2, gamma, beta)
    jax.block_until_ready(out)

    ref = _reference(x, w1, b1, w2, b2, gamma, beta)
    assert out.shape == x.shape
    assert jnp.allclose(out, ref, atol=1e-4, rtol=1e-4), "mismatch vs reference"

    print("KERNEL_OK")
</pallas_src>

<mosaic_0001>
module attributes {stable_mosaic.version = 11 : i64} {
  func.func @_ffn_layernorm_kernel(%arg0: i32, %arg1: memref<8x128xf32, #tpu.memory_space<vmem>>, %arg2: memref<128x256xf32, #tpu.memory_space<vmem>>, %arg3: memref<1x256xf32, #tpu.memory_space<vmem>>, %arg4: memref<256x128xf32, #tpu.memory_space<vmem>>, %arg5: memref<1x128xf32, #tpu.memory_space<vmem>>, %arg6: memref<1x128xf32, #tpu.memory_space<vmem>>, %arg7: memref<1x128xf32, #tpu.memory_space<vmem>>, %arg8: memref<128x128xf32, #tpu.memory_space<vmem>>, %arg9: memref<8x128xf32, #tpu.memory_space<vmem>>) attributes {dimension_semantics = [#tpu.dimension_semantics<parallel>], iteration_bounds = array<i64: 1>, scalar_prefetch = 0 : i64, scratch_operands = 0 : i64, tpu.core_type = #tpu.core_type<tc>, window_params = [{transform_indices = @transform_0, window_bounds = array<i64: 8, 128>}, {pipeline_mode = #tpu.pipeline_mode<synchronous>, transform_indices = @transform_1, window_bounds = array<i64: 128, 256>}, {pipeline_mode = #tpu.pipeline_mode<synchronous>, transform_indices = @transform_2, window_bounds = array<i64: 1, 256>}, {pipeline_mode = #tpu.pipeline_mode<synchronous>, transform_indices = @transform_3, window_bounds = array<i64: 256, 128>}, {pipeline_mode = #tpu.pipeline_mode<synchronous>, transform_indices = @transform_4, window_bounds = array<i64: 1, 128>}, {pipeline_mode = #tpu.pipeline_mode<synchronous>, transform_indices = @transform_5, window_bounds = array<i64: 1, 128>}, {pipeline_mode = #tpu.pipeline_mode<synchronous>, transform_indices = @transform_6, window_bounds = array<i64: 1, 128>}, {pipeline_mode = #tpu.pipeline_mode<synchronous>, transform_indices = @transform_7, window_bounds = array<i64: 128, 128>}, {transform_indices = @transform_8, window_bounds = array<i64: 8, 128>}]} {
    %c0 = arith.constant 0 : index
    %c0_0 = arith.constant 0 : index
    %0 = vector.load %arg1[%c0, %c0_0] : memref<8x128xf32, #tpu.memory_space<vmem>>, vector<8x128xf32>
    %c0_1 = arith.constant 0 : index
    %c0_2 = arith.constant 0 : index
    %1 = vector.load %arg2[%c0_1, %c0_2] : memref<128x256xf32, #tpu.memory_space<vmem>>, vector<128x256xf32>
    %cst = arith.constant dense<0.000000e+00> : vector<8x256xf32>
    %2 = tpu.matmul %0, %1, %cst {dimension_numbers = #tpu.dot_dimension_numbers<[1], [0], [0], [1], [0, 0, 1, 1], [], []>} : vector<8x128xf32>, vector<128x256xf32>, vector<8x256xf32> -> vector<8x256xf32>
    %c0_3 = arith.constant 0 : index
    %c0_4 = arith.constant 0 : index
    %3 = vector.load %arg3[%c0_3, %c0_4] : memref<1x256xf32, #tpu.memory_space<vmem>>, vector<1x256xf32>
    %4 = vector.broadcast %3 : vector<1x256xf32> to vector<8x256xf32>
    %5 = arith.addf %2, %4 : vector<8x256xf32>
    %cst_5 = arith.constant 0.000000e+00 : f32
    %6 = vector.broadcast %cst_5 : f32 to vector<8x256xf32>
    %7 = arith.maximumf %5, %6 : vector<8x256xf32>
    %c0_6 = arith.constant 0 : index
    %c0_7 = arith.constant 0 : index
    %8 = vector.load %arg4[%c0_6, %c0_7] : memref<256x128xf32, #tpu.memory_space<vmem>>, vector<256x128xf32>
    %cst_8 = arith.constant dense<0.000000e+00> : vector<8x128xf32>
    %9 = tpu.matmul %7, %8, %cst_8 {dimension_numbers = #tpu.dot_dimension_numbers<[1], [0], [0], [1], [0, 0, 1, 1], [], []>} : vector<8x256xf32>, vector<256x128xf32>, vector<8x128xf32> -> vector<8x128xf32>
    %c0_9 = arith.constant 0 : index
    %c0_10 = arith.constant 0 : index
    %10 = vector.load %arg5[%c0_9, %c0_10] : memref<1x128xf32, #tpu.memory_space<vmem>>, vector<1x128xf32>
    %11 = vector.broadcast %10 : vector<1x128xf32> to vector<8x128xf32>
    %12 = arith.addf %9, %11 : vector<8x128xf32>
    %13 = arith.addf %0, %12 : vector<8x128xf32>
    %c0_11 = arith.constant 0 : index
    %c0_12 = arith.constant 0 : index
    %14 = vector.load %arg8[%c0_11, %c0_12] : memref<128x128xf32, #tpu.memory_space<vmem>>, vector<128x128xf32>
    %cst_13 = arith.constant dense<0.000000e+00> : vector<8x128xf32>
    %15 = tpu.matmul %13, %14, %cst_13 {dimension_numbers = #tpu.dot_dimension_numbers<[1], [0], [0], [1], [0, 0, 1, 1], [], []>, precision = #tpu.contract_precision<fp32>} : vector<8x128xf32>, vector<128x128xf32>, vector<8x128xf32> -> vector<8x128xf32>
    %16 = arith.subf %13, %15 : vector<8x128xf32>
    %17 = arith.mulf %16, %16 : vector<8x128xf32>
    %c0_14 = arith.constant 0 : index
    %c0_15 = arith.constant 0 : index
    %18 = vector.load %arg8[%c0_14, %c0_15] : memref<128x128xf32, #tpu.memory_space<vmem>>, vector<128x128xf32>
    %cst_16 = arith.constant dense<0.000000e+00> : vector<8x128xf32>
    %19 = tpu.matmul %17, %18, %cst_16 {dimension_numbers = #tpu.dot_dimension_numbers<[1], [0], [0], [1], [0, 0, 1, 1], [], []>, precision = #tpu.contract_precision<fp32>} : vector<8x128xf32>, vector<128x128xf32>, vector<8x128xf32> -> vector<8x128xf32>
    %cst_17 = arith.constant 9.99999974E-6 : f32
    %20 = vector.broadcast %cst_17 : f32 to vector<8x128xf32>
    %21 = arith.addf %19, %20 : vector<8x128xf32>
    %22 = math.rsqrt %21 : vector<8x128xf32>
    %23 = arith.mulf %16, %22 : vector<8x128xf32>
    %c0_18 = arith.constant 0 : index
    %c0_19 = arith.constant 0 : index
    %24 = vector.load %arg6[%c0_18, %c0_19] : memref<1x128xf32, #tpu.memory_space<vmem>>, vector<1x128xf32>
    %25 = vector.broadcast %24 : vector<1x128xf32> to vector<8x128xf32>
    %26 = arith.mulf %23, %25 : vector<8x128xf32>
    %c0_20 = arith.constant 0 : index
    %c0_21 = arith.constant 0 : index
    %27 = vector.load %arg7[%c0_20, %c0_21] : memref<1x128xf32, #tpu.memory_space<vmem>>, vector<1x128xf32>
    %28 = vector.broadcast %27 : vector<1x128xf32> to vector<8x128xf32>
    %29 = arith.addf %26, %28 : vector<8x128xf32>
    %c0_22 = arith.constant 0 : index
    %c0_23 = arith.constant 0 : index
    %30 = vector.load %arg9[%c0_22, %c0_23] : memref<8x128xf32, #tpu.memory_space<vmem>>, vector<8x128xf32>
    tpu.vector_store %arg9[%c0_22, %c0_23], %29 {strides = array<i32>} : memref<8x128xf32, #tpu.memory_space<vmem>>, vector<8x128xf32>,
    return
  }
  func.func @transform_0(%arg0: i32) -> (i32, i32) {
    %c0_i32 = arith.constant 0 : i32
    %c0_i32_0 = arith.constant 0 : i32
    return %arg0, %c0_i32 : i32, i32
  }
  func.func @transform_1(%arg0: i32) -> (i32, i32) {
    %c0_i32 = arith.constant 0 : i32
    %c0_i32_0 = arith.constant 0 : i32
    %c0_i32_1 = arith.constant 0 : i32
    return %c0_i32, %c0_i32_0 : i32, i32
  }
  func.func @transform_2(%arg0: i32) -> (i32, i32) {
    %c0_i32 = arith.constant 0 : i32
    %c0_i32_0 = arith.constant 0 : i32
    %c0_i32_1 = arith.constant 0 : i32
    return %c0_i32, %c0_i32_0 : i32, i32
  }
  func.func @transform_3(%arg0: i32) -> (i32, i32) {
    %c0_i32 = arith.constant 0 : i32
    %c0_i32_0 = arith.constant 0 : i32
    %c0_i32_1 = arith.constant 0 : i32
    return %c0_i32, %c0_i32_0 : i32, i32
  }
  func.func @transform_4(%arg0: i32) -> (i32, i32) {
    %c0_i32 = arith.constant 0 : i32
    %c0_i32_0 = arith.constant 0 : i32
    %c0_i32_1 = arith.constant 0 : i32
    return %c0_i32, %c0_i32_0 : i32, i32
  }
  func.func @transform_5(%arg0: i32) -> (i32, i32) {
    %c0_i32 = arith.constant 0 : i32
    %c0_i32_0 = arith.constant 0 : i32
    %c0_i32_1 = arith.constant 0 : i32
    return %c0_i32, %c0_i32_0 : i32, i32
  }
  func.func @transform_6(%arg0: i32) -> (i32, i32) {
    %c0_i32 = arith.constant 0 : i32
    %c0_i32_0 = arith.constant 0 : i32
    %c0_i32_1 = arith.constant 0 : i32
    return %c0_i32, %c0_i32_0 : i32, i32
  }
  func.func @transform_7(%arg0: i32) -> (i32, i32) {
    %c0_i32 = arith.constant 0 : i32
    %c0_i32_0 = arith.constant 0 : i32
    %c0_i32_1 = arith.constant 0 : i32
    return %c0_i32, %c0_i32_0 : i32, i32
  }
  func.func @transform_8(%arg0: i32) -> (i32, i32) {
    %c0_i32 = arith.constant 0 : i32
    %c0_i32_0 = arith.constant 0 : i32
    return %arg0, %c0_i32 : i32, i32
  }
}

</mosaic_0001>

<llo_original>
// kernel: tile.23
$region0: #{tile.23}
  #allocation0 [shape = 's32[1]{0}', space=sflag, size = 0x4, scoped, tag = 'scoped memory for tile.23']
  %s0 = inlined_call_operand.vmem [shape: f32[64], index: 0, kind: input, shape index: {}]
  %s1 = inlined_call_operand.vmem [shape: f32[4,64], index: 1, kind: output, shape index: {}]
  // Predicated region
  $region2: #{tile.23} parent=0 // pred_check
    _
  $region3: #{tile.23} parent=0 // pred_check_branch
    %3 = sbr.rel (0) target = $region5
  $region4: #{tile.23} parent=0 // pred_region
    _
  $region5: #{tile.23} parent=0 // pred_fallthru
    _
  %v4 = vld [vmem:[%s0] ss:$0 sm:$0xff]
  %5 = vst [vmem:[%s1] sm:$0xf] %v4

// kernel: tile.24
$region0: #{tile.24}
  %s0 = inlined_call_operand.vmem [shape: f32[4,64], index: 0, kind: input, shape index: {}]
  %s1 = inlined_call_operand.vmem [shape: f32[1,256], index: 1, kind: output, shape index: {}]
  $region1: #{tile.24} parent=0
    #allocation0 [shape = 'u8[8192]{0}', space=vmem, size = 0x2000, scoped, tag = 'scoped mem for output reshape']
    #allocation1 [shape = 'u8[4096]{0}', space=vmem, size = 0x1000, scoped, tag = 'scoped mem for input reshape']
    %s3 = ssub.s32 16, 1
    %v4 = vld [vmem:[%s0] sm:%s3]
    %5 = vst [vmem:[#allocation1] sm:%s3] %v4
    %s6 = smov 3
    %v7 = vld [vmem:[#allocation1] ss:$2 sm:%s6]
    %vm8 = vcmask 523264
    %9 = vst.msk [vmem:[#allocation0] ss:$8 sm:$0x3] %vm8, %v7
    %s10 = scalar_lea.vmem [#allocation1], 1
    %s11 = smov 3
    %v12 = vld [vmem:[%s10] ss:$2 sm:%s11]
    %13 = vrot.lane.b32.xlu0 %v12, 64
    %v14 = vpop.permute.xlu0 %13
    %vm15 = vcmask 1048064
    %16 = vst.msk [vmem:[#allocation0] ss:$8 sm:$0x3] %vm15, %v14
    %s18 = ssub.s32 2, 1
    %v19 = vld [vmem:[#allocation0] sm:%s18]
    %s21 = ssub.s32 2, 1
    %22 = vst [vmem:[%s1] sm:%s21] %v19
    %s23 = scalar_lea.vmem [#allocation0], 8
    %v24 = vld [vmem:[%s23] sm:%s18]
    %s26 = ssub.s32 2, 1
    %s27 = scalar_lea.vmem %s1, 1
    %28 = vst [vmem:[%s27] sm:%s26] %v24

// kernel: tile.28
$region0: #{tile.28}
  #allocation0 [shape = 's32[1]{0}', space=sflag, size = 0x4, scoped, tag = 'scoped memory for tile.28']
  %s0 = inlined_call_operand.vmem [shape: f32[32], index: 0, kind: input, shape index: {}]
  %s1 = inlined_call_operand.vmem [shape: f32[4,32], index: 1, kind: output, shape index: {}]
  // Predicated region
  $region2: #{tile.28} parent=0 // pred_check
    _
  $region3: #{tile.28} parent=0 // pred_check_branch
    %3 = sbr.rel (0) target = $region5
  $region4: #{tile.28} parent=0 // pred_region
    _
  $region5: #{tile.28} parent=0 // pred_fallthru
    _
  %v4 = vld [vmem:[%s0] ss:$0 sm:$0xff]
  %5 = vst [vmem:[%s1] sm:$0xf] %v4

// kernel: tile.29
$region0: #{tile.29}
  %s0 = inlined_call_operand.vmem [shape: f32[4,32], index: 0, kind: input, shape index: {}]
  %s1 = inlined_call_operand.vmem [shape: f32[1,128], index: 1, kind: output, shape index: {}]
  $region1: #{tile.29} parent=0
    #allocation0 [shape = 'u8[4096]{0}', space=vmem, size = 0x1000, scoped, tag = 'scoped mem for output reshape']
    #allocation1 [shape = 'u8[4096]{0}', space=vmem, size = 0x1000, scoped, tag = 'scoped mem for input reshape']
    %s3 = ssub.s32 16, 1
    %v4 = vld [vmem:[%s0] sm:%s3]
    %5 = vst [vmem:[#allocation1] sm:%s3] %v4
    %v6 = vld [vmem:[#allocation1] sm:$0x1]
    %vm7 = vcmask 261120
    %8 = vst.msk [vmem:[#allocation0] sm:$0x1] %vm7, %v6
    %s9 = scalar_lea.vmem [#allocation1], 3
    %v10 = vld [vmem:[%s9] sm:$0x1]
    %11 = vrot.lane.b32.xlu0 %v10, 96
    %v12 = vpop.permute.xlu0 %11
    %vm13 = vcmask 1048320
    %14 = vst.msk [vmem:[#allocation0] sm:$0x1] %vm13, %v12
    %s15 = scalar_lea.vmem [#allocation1], 2
    %v16 = vld [vmem:[%s15] sm:$0x1]
    %17 = vrot.lane.b32.xlu0 %v16, 64
    %v18 = vpop.permute.xlu0 %17
    %vm19 = vcmask 785920
    %20 = vst.msk [vmem:[#allocation0] sm:$0x1] %vm19, %v18
    %s21 = scalar_lea.vmem [#allocation1], 1
    %v22 = vld [vmem:[%s21] sm:$0x1]
    %23 = vrot.lane.b32.xlu0 %v22, 32
    %v24 = vpop.permute.xlu0 %23
    %vm25 = vcmask 523520
    %26 = vst.msk [vmem:[#allocation0] sm:$0x1] %vm25, %v24
    %s28 = ssub.s32 2, 1
    %v29 = vld [vmem:[#allocation0] sm:%s28]
    %s31 = ssub.s32 2, 1
    %32 = vst [vmem:[%s1] sm:%s31] %v29

// kernel: baseline_layer.1
$region0: #{baseline_layer.1}
  #allocation0 [shape = 'u32[]', space=smem, size = 0x4, offset = 0x4, fixed_abs, tag = 'smem constant byte address 0x4 - core index']
  #allocation1 [shape = 'u32[72,128]{1,0:T(1,128)}', space=vmem, size = 0x9000, scoped, tag = 'internal scratch']
  %s0 = inlined_call_operand.vmem [shape: f32[8,128], index: 0, kind: input, shape index: {}]
  %s1 = inlined_call_operand.vmem [shape: f32[128,256], index: 1, kind: input, shape index: {}]
  %s2 = inlined_call_operand.vmem [shape: f32[1,256], index: 2, kind: input, shape index: {}]
  %s3 = inlined_call_operand.vmem [shape: f32[256,128], index: 3, kind: input, shape index: {}]
  %s4 = inlined_call_operand.vmem [shape: f32[1,128], index: 4, kind: input, shape index: {}]
  %s5 = inlined_call_operand.vmem [shape: f32[1,128], index: 5, kind: input, shape index: {}]
  %s6 = inlined_call_operand.vmem [shape: f32[1,128], index: 6, kind: input, shape index: {}]
  %s7 = inlined_call_operand.vmem [shape: f32[128,128], index: 7, kind: input, shape index: {}]
  %s8 = inlined_call_operand.vmem [shape: f32[8,128], index: 8, kind: output, shape index: {}]
  %s9 = sld [smem:[#allocation0]]
  $region42: #{baseline_layer.1} parent=0
    _
  %s11 = ssub.s32 1, %s9
  %s12 = scalar_select 0, %s11, %s9
  // Predicated region
  $region2: #{baseline_layer.1} parent=0 // pred_check
    _
  $region3: #{baseline_layer.1} parent=0 // pred_check_branch
    %14 = sbr.rel (0) target = $region5
  $region4: #{baseline_layer.1} parent=0 // pred_region
    _
  $region5: #{baseline_layer.1} parent=0 // pred_fallthru
    _
  // Predicated region
  $region6: #{baseline_layer.1} parent=0 // pred_check
    _
  $region7: #{baseline_layer.1} parent=0 // pred_check_branch
    %16 = sbr.rel (0) target = $region9
  $region8: #{baseline_layer.1} parent=0 // pred_region
    _
  $region9: #{baseline_layer.1} parent=0 // pred_fallthru
    _
  // Predicated region
  $region10: #{baseline_layer.1} parent=0 // pred_check
    _
  $region11: #{baseline_layer.1} parent=0 // pred_check_branch
    %18 = sbr.rel (0) target = $region13
  $region12: #{baseline_layer.1} parent=0 // pred_region
    _
  $region13: #{baseline_layer.1} parent=0 // pred_fallthru
    _
  // Predicated region
  $region14: #{baseline_layer.1} parent=0 // pred_check
    _
  $region15: #{baseline_layer.1} parent=0 // pred_check_branch
    %20 = sbr.rel (0) target = $region17
  $region16: #{baseline_layer.1} parent=0 // pred_region
    _
  $region17: #{baseline_layer.1} parent=0 // pred_fallthru
    _
  // Predicated region
  $region18: #{baseline_layer.1} parent=0 // pred_check
    _
  $region19: #{baseline_layer.1} parent=0 // pred_check_branch
    %22 = sbr.rel (0) target = $region21
  $region20: #{baseline_layer.1} parent=0 // pred_region
    _
  $region21: #{baseline_layer.1} parent=0 // pred_fallthru
    _
  // Predicated region
  $region22: #{baseline_layer.1} parent=0 // pred_check
    _
  $region23: #{baseline_layer.1} parent=0 // pred_check_branch
    %24 = sbr.rel (0) target = $region25
  $region24: #{baseline_layer.1} parent=0 // pred_region
    _
  $region25: #{baseline_layer.1} parent=0 // pred_fallthru
    _
  // Predicated region
  $region26: #{baseline_layer.1} parent=0 // pred_check
    _
  $region27: #{baseline_layer.1} parent=0 // pred_check_branch
    %26 = sbr.rel (0) target = $region29
  $region28: #{baseline_layer.1} parent=0 // pred_region
    _
  $region29: #{baseline_layer.1} parent=0 // pred_fallthru
    _
  // Predicated region
  $region30: #{baseline_layer.1} parent=0 // pred_check
    _
  $region31: #{baseline_layer.1} parent=0 // pred_check_branch
    %28 = sbr.rel (0) target = $region33
  $region32: #{baseline_layer.1} parent=0 // pred_region
    _
  $region33: #{baseline_layer.1} parent=0 // pred_fallthru
    _
  %v29 = vld [vmem:[%s0] sm:$0xff]
  %v30 = vld [vmem:[%s1] sm:$0xff]
  %v31 = vld [vmem:[%s1 + $0x8] sm:$0xff]
  %v32 = vld [vmem:[%s1 + $0x10] sm:$0xff]
  %v33 = vld [vmem:[%s1 + $0x18] sm:$0xff]
  %v34 = vld [vmem:[%s1 + $0x20] sm:$0xff]
  %v35 = vld [vmem:[%s1 + $0x28] sm:$0xff]
  %v36 = vld [vmem:[%s1 + $0x30] sm:$0xff]
  %v37 = vld [vmem:[%s1 + $0x38] sm:$0xff]
  %v38 = vld [vmem:[%s1 + $0x40] sm:$0xff]
  %v39 = vld [vmem:[%s1 + $0x48] sm:$0xff]
  %v40 = vld [vmem:[%s1 + $0x50] sm:$0xff]
  %v41 = vld [vmem:[%s1 + $0x58] sm:$0xff]
  %v42 = vld [vmem:[%s1 + $0x60] sm:$0xff]
  %v43 = vld [vmem:[%s1 + $0x68] sm:$0xff]
  %v44 = vld [vmem:[%s1 + $0x70] sm:$0xff]
  %v45 = vld [vmem:[%s1 + $0x78] sm:$0xff]
  %v46 = vld [vmem:[%s1 + $0x80] sm:$0xff]
  %v47 = vld [vmem:[%s1 + $0x88] sm:$0xff]
  %v48 = vld [vmem:[%s1 + $0x90] sm:$0xff]
  %v49 = vld [vmem:[%s1 + $0x98] sm:$0xff]
  %v50 = vld [vmem:[%s1 + $0xa0] sm:$0xff]
  %v51 = vld [vmem:[%s1 + $0xa8] sm:$0xff]
  %v52 = vld [vmem:[%s1 + $0xb0] sm:$0xff]
  %v53 = vld [vmem:[%s1 + $0xb8] sm:$0xff]
  %v54 = vld [vmem:[%s1 + $0xc0] sm:$0xff]
  %v55 = vld [vmem:[%s1 + $0xc8] sm:$0xff]
  %v56 = vld [vmem:[%s1 + $0xd0] sm:$0xff]
  %v57 = vld [vmem:[%s1 + $0xd8] sm:$0xff]
  %v58 = vld [vmem:[%s1 + $0xe0] sm:$0xff]
  %v59 = vld [vmem:[%s1 + $0xe8] sm:$0xff]
  %v60 = vld [vmem:[%s1 + $0xf0] sm:$0xff]
  %v61 = vld [vmem:[%s1 + $0xf8] sm:$0xff]
  %v62 = vld [vmem:[%s2] sm:$0x3]
  %v64 = vperm.slane %v62, 0
  %v65 = vperm.slane %v62, 1
  %68 = vmatpush.msra.mxu0 %v60
  %69 = vmatpush.msra.mxu0 %v58
  %70 = vmatpush.msra.mxu0 %v56
  %71 = vmatpush.msra.mxu0 %v54
  %72 = vmatpush.msra.mxu0 %v52
  %73 = vmatpush.msra.mxu0 %v50
  %74 = vmatpush.msra.mxu0 %v48
  %75 = vmatpush.msra.mxu0 %v46
  %76 = vmatpush.msra.mxu0 %v44
  %77 = vmatpush.msra.mxu0 %v42
  %78 = vmatpush.msra.mxu0 %v40
  %79 = vmatpush.msra.mxu0 %v38
  %80 = vmatpush.msra.mxu0 %v36
  %81 = vmatpush.msra.mxu0 %v34
  %82 = vmatpush.msra.mxu0 %v32
  %83 = vmatpush.msra.mxu0 %v30
  %84 = vmatmul.f32.gmra.mxu0 %v29
  %v85 = vpop.f32.mrf.mxu0
  %v86 = vadd.f32 %v64, %v85
  %87 = vdwg.mxu0
  %88 = vmatpush.msra.mxu0 %v61
  %89 = vmatpush.msra.mxu0 %v59
  %90 = vmatpush.msra.mxu0 %v57
  %91 = vmatpush.msra.mxu0 %v55
  %92 = vmatpush.msra.mxu0 %v53
  %93 = vmatpush.msra.mxu0 %v51
  %94 = vmatpush.msra.mxu0 %v49
  %95 = vmatpush.msra.mxu0 %v47
  %96 = vmatpush.msra.mxu0 %v45
  %97 = vmatpush.msra.mxu0 %v43
  %98 = vmatpush.msra.mxu0 %v41
  %99 = vmatpush.msra.mxu0 %v39
  %100 = vmatpush.msra.mxu0 %v37
  %101 = vmatpush.msra.mxu0 %v35
  %102 = vmatpush.msra.mxu0 %v33
  %103 = vmatpush.msra.mxu0 %v31
  %104 = vmatmul.f32.gmra.mxu0 %v29
  %v105 = vpop.f32.mrf.mxu0
  %v106 = vadd.f32 %v65, %v105
  %107 = vdwg.mxu0
  %v108 = vmax.f32 %v86, 0.0
  %v109 = vmax.f32 %v106, 0.0
  %v110 = vld [vmem:[%s3] sm:$0xff]
  %v111 = vld [vmem:[%s3 + $0x8] sm:$0xff]
  %v112 = vld [vmem:[%s3 + $0x10] sm:$0xff]
  %v113 = vld [vmem:[%s3 + $0x18] sm:$0xff]
  %v114 = vld [vmem:[%s3 + $0x20] sm:$0xff]
  %v115 = vld [vmem:[%s3 + $0x28] sm:$0xff]
  %v116 = vld [vmem:[%s3 + $0x30] sm:$0xff]
  %v117 = vld [vmem:[%s3 + $0x38] sm:$0xff]
  %v118 = vld [vmem:[%s3 + $0x40] sm:$0xff]
  %v119 = vld [vmem:[%s3 + $0x48] sm:$0xff]
  %v120 = vld [vmem:[%s3 + $0x50] sm:$0xff]
  %v121 = vld [vmem:[%s3 + $0x58] sm:$0xff]
  %v122 = vld [vmem:[%s3 + $0x60] sm:$0xff]
  %v123 = vld [vmem:[%s3 + $0x68] sm:$0xff]
  %v124 = vld [vmem:[%s3 + $0x70] sm:$0xff]
  %v125 = vld [vmem:[%s3 + $0x78] sm:$0xff]
  %v126 = vld [vmem:[%s3 + $0x80] sm:$0xff]
  %v127 = vld [vmem:[%s3 + $0x88] sm:$0xff]
  %v128 = vld [vmem:[%s3 + $0x90] sm:$0xff]
  %v129 = vld [vmem:[%s3 + $0x98] sm:$0xff]
  %v130 = vld [vmem:[%s3 + $0xa0] sm:$0xff]
  %v131 = vld [vmem:[%s3 + $0xa8] sm:$0xff]
  %v132 = vld [vmem:[%s3 + $0xb0] sm:$0xff]
  %v133 = vld [vmem:[%s3 + $0xb8] sm:$0xff]
  %v134 = vld [vmem:[%s3 + $0xc0] sm:$0xff]
  %v135 = vld [vmem:[%s3 + $0xc8] sm:$0xff]
  %v136 = vld [vmem:[%s3 + $0xd0] sm:$0xff]
  %v137 = vld [vmem:[%s3 + $0xd8] sm:$0xff]
  %v138 = vld [vmem:[%s3 + $0xe0] sm:$0xff]
  %v139 = vld [vmem:[%s3 + $0xe8] sm:$0xff]
  %v140 = vld [vmem:[%s3 + $0xf0] sm:$0xff]
  %v141 = vld [vmem:[%s3 + $0xf8] sm:$0xff]
  %v142 = vld [vmem:[%s4] sm:$0x1]
  %v144 = vperm.slane %v142, 0
  %146 = vmatpush.msra.mxu0 %v125
  %147 = vmatpush.msra.mxu0 %v124
  %148 = vmatpush.msra.mxu0 %v123
  %149 = vmatpush.msra.mxu0 %v122
  %150 = vmatpush.msra.mxu0 %v121
  %151 = vmatpush.msra.mxu0 %v120
  %152 = vmatpush.msra.mxu0 %v119
  %153 = vmatpush.msra.mxu0 %v118
  %154 = vmatpush.msra.mxu0 %v117
  %155 = vmatpush.msra.mxu0 %v116
  %156 = vmatpush.msra.mxu0 %v115
  %157 = vmatpush.msra.mxu0 %v114
  %158 = vmatpush.msra.mxu0 %v113
  %159 = vmatpush.msra.mxu0 %v112
  %160 = vmatpush.msra.mxu0 %v111
  %161 = vmatpush.msra.mxu0 %v110
  %162 = vmatmul.f32.gmra.mxu0 %v108
  %v163 = vpop.f32.mrf.mxu0
  %v164 = vadd.f32 %v144, %v163
  %165 = vdwg.mxu0
  %166 = vmatpush.msra.mxu0 %v141
  %167 = vmatpush.msra.mxu0 %v140
  %168 = vmatpush.msra.mxu0 %v139
  %169 = vmatpush.msra.mxu0 %v138
  %170 = vmatpush.msra.mxu0 %v137
  %171 = vmatpush.msra.mxu0 %v136
  %172 = vmatpush.msra.mxu0 %v135
  %173 = vmatpush.msra.mxu0 %v134
  %174 = vmatpush.msra.mxu0 %v133
  %175 = vmatpush.msra.mxu0 %v132
  %176 = vmatpush.msra.mxu0 %v131
  %177 = vmatpush.msra.mxu0 %v130
  %178 = vmatpush.msra.mxu0 %v129
  %179 = vmatpush.msra.mxu0 %v128
  %180 = vmatpush.msra.mxu0 %v127
  %181 = vmatpush.msra.mxu0 %v126
  %182 = vmatmul.f32.gmra.mxu0 %v109
  %v183 = vpop.f32.mrf.mxu0
  %v184 = vadd.f32 %v164, %v183
  %185 = vdwg.mxu0
  %v186 = vadd.f32 %v29, %v184
  %v187 = vld [vmem:[%s7] sm:$0xff]
  %v188 = vld [vmem:[%s7 + $0x8] sm:$0xff]
  %v189 = vld [vmem:[%s7 + $0x10] sm:$0xff]
  %v190 = vld [vmem:[%s7 + $0x18] sm:$0xff]
  %v191 = vld [vmem:[%s7 + $0x20] sm:$0xff]
  %v192 = vld [vmem:[%s7 + $0x28] sm:$0xff]
  %v193 = vld [vmem:[%s7 + $0x30] sm:$0xff]
  %v194 = vld [vmem:[%s7 + $0x38] sm:$0xff]
  %v195 = vld [vmem:[%s7 + $0x40] sm:$0xff]
  %v196 = vld [vmem:[%s7 + $0x48] sm:$0xff]
  %v197 = vld [vmem:[%s7 + $0x50] sm:$0xff]
  %v198 = vld [vmem:[%s7 + $0x58] sm:$0xff]
  %v199 = vld [vmem:[%s7 + $0x60] sm:$0xff]
  %v200 = vld [vmem:[%s7 + $0x68] sm:$0xff]
  %v201 = vld [vmem:[%s7 + $0x70] sm:$0xff]
  %v202 = vld [vmem:[%s7 + $0x78] sm:$0xff]
  %v203 = vand.u32 %v202, 4294901760
  %204 = vmatpush.msra.mxu0 %v203
  %v205 = vand.u32 %v201, 4294901760
  %206 = vmatpush.msra.mxu0 %v205
  %v207 = vand.u32 %v200, 4294901760
  %208 = vmatpush.msra.mxu0 %v207
  %v209 = vand.u32 %v199, 4294901760
  %210 = vmatpush.msra.mxu0 %v209
  %v211 = vand.u32 %v198, 4294901760
  %212 = vmatpush.msra.mxu0 %v211
  %v213 = vand.u32 %v197, 4294901760
  %214 = vmatpush.msra.mxu0 %v213
  %v215 = vand.u32 %v196, 4294901760
  %216 = vmatpush.msra.mxu0 %v215
  %v217 = vand.u32 %v195, 4294901760
  %218 = vmatpush.msra.mxu0 %v217
  %v219 = vand.u32 %v194, 4294901760
  %220 = vmatpush.msra.mxu0 %v219
  %v221 = vand.u32 %v193, 4294901760
  %222 = vmatpush.msra.mxu0 %v221
  %v223 = vand.u32 %v192, 4294901760
  %224 = vmatpush.msra.mxu0 %v223
  %v225 = vand.u32 %v191, 4294901760
  %226 = vmatpush.msra.mxu0 %v225
  %v227 = vand.u32 %v190, 4294901760
  %228 = vmatpush.msra.mxu0 %v227
  %v229 = vand.u32 %v189, 4294901760
  %230 = vmatpush.msra.mxu0 %v229
  %v231 = vand.u32 %v188, 4294901760
  %232 = vmatpush.msra.mxu0 %v231
  %v233 = vand.u32 %v187, 4294901760
  %234 = vmatpush.msra.mxu0 %v233
  %v235 = vand.u32 %v186, 4294901760
  %v236 = vsub.f32 %v186, %v235
  %v237 = vand.u32 %v236, 4294901760
  %v238 = vsub.f32 %v236, %v237
  %v239 = vand.u32 %v238, 4294901760
  %240 = vmatmul.f32.gmra.mxu0 %v239
  %v241 = vpop.f32.mrf.mxu0
  %v242 = vadd.f32 0.0, %v241
  %243 = vdwg.mxu0
  %v244 = vand.u32 %v202, 4294901760
  %v245 = vsub.f32 %v202, %v244
  %v246 = vand.u32 %v245, 4294901760
  %v247 = vsub.f32 %v245, %v246
  %v248 = vand.u32 %v247, 4294901760
  %249 = vmatpush.msra.mxu0 %v248
  %v250 = vand.u32 %v201, 4294901760
  %v251 = vsub.f32 %v201, %v250
  %v252 = vand.u32 %v251, 4294901760
  %v253 = vsub.f32 %v251, %v252
  %v254 = vand.u32 %v253, 4294901760
  %255 = vmatpush.msra.mxu0 %v254
  %v256 = vand.u32 %v200, 4294901760
  %v257 = vsub.f32 %v200, %v256
  %v258 = vand.u32 %v257, 4294901760
  %v259 = vsub.f32 %v257, %v258
  %v260 = vand.u32 %v259, 4294901760
  %261 = vmatpush.msra.mxu0 %v260
  %v262 = vand.u32 %v199, 4294901760
  %v263 = vsub.f32 %v199, %v262
  %v264 = vand.u32 %v263, 4294901760
  %v265 = vsub.f32 %v263, %v264
  %v266 = vand.u32 %v265, 4294901760
  %267 = vmatpush.msra.mxu0 %v266
  %v268 = vand.u32 %v198, 4294901760
  %v269 = vsub.f32 %v198, %v268
  %v270 = vand.u32 %v269, 4294901760
  %v271 = vsub.f32 %v269, %v270
  %v272 = vand.u32 %v271, 4294901760
  %273 = vmatpush.msra.mxu0 %v272
  %v274 = vand.u32 %v197, 4294901760
  %v275 = vsub.f32 %v197, %v274
  %v276 = vand.u32 %v275, 4294901760
  %v277 = vsub.f32 %v275, %v276
  %v278 = vand.u32 %v277, 4294901760
  %279 = vmatpush.msra.mxu0 %v278
  %v280 = vand.u32 %v196, 4294901760
  %v281 = vsub.f32 %v196, %v280
  %v282 = vand.u32 %v281, 4294901760
  %v283 = vsub.f32 %v281, %v282
  %v284 = vand.u32 %v283, 4294901760
  %285 = vmatpush.msra.mxu0 %v284
  %v286 = vand.u32 %v195, 4294901760
  %v287 = vsub.f32 %v195, %v286
  %v288 = vand.u32 %v287, 4294901760
  %v289 = vsub.f32 %v287, %v288
  %v290 = vand.u32 %v289, 4294901760
  %291 = vmatpush.msra.mxu0 %v290
  %v292 = vand.u32 %v194, 4294901760
  %v293 = vsub.f32 %v194, %v292
  %v294 = vand.u32 %v293, 4294901760
  %v295 = vsub.f32 %v293, %v294
  %v296 = vand.u32 %v295, 4294901760
  %297 = vmatpush.msra.mxu0 %v296
  %v298 = vand.u32 %v193, 4294901760
  %v299 = vsub.f32 %v193, %v298
  %v300 = vand.u32 %v299, 4294901760
  %v301 = vsub.f32 %v299, %v300
  %v302 = vand.u32 %v301, 4294901760
  %303 = vmatpush.msra.mxu0 %v302
  %v304 = vand.u32 %v192, 4294901760
  %v305 = vsub.f32 %v192, %v304
  %v306 = vand.u32 %v305, 4294901760
  %v307 = vsub.f32 %v305, %v306
  %v308 = vand.u32 %v307, 4294901760
  %309 = vmatpush.msra.mxu0 %v308
  %v310 = vand.u32 %v191, 4294901760
  %v311 = vsub.f32 %v191, %v310
  %v312 = vand.u32 %v311, 4294901760
  %v313 = vsub.f32 %v311, %v312
  %v314 = vand.u32 %v313, 4294901760
  %315 = vmatpush.msra.mxu0 %v314
  %v316 = vand.u32 %v190, 4294901760
  %v317 = vsub.f32 %v190, %v316
  %v318 = vand.u32 %v317, 4294901760
  %v319 = vsub.f32 %v317, %v318
  %v320 = vand.u32 %v319, 4294901760
  %321 = vmatpush.msra.mxu0 %v320
  %v322 = vand.u32 %v189, 4294901760
  %v323 = vsub.f32 %v189, %v322
  %v324 = vand.u32 %v323, 4294901760
  %v325 = vsub.f32 %v323, %v324
  %v326 = vand.u32 %v325, 4294901760
  %327 = vmatpush.msra.mxu0 %v326
  %v328 = vand.u32 %v188, 4294901760
  %v329 = vsub.f32 %v188, %v328
  %v330 = vand.u32 %v329, 4294901760
  %v331 = vsub.f32 %v329, %v330
  %v332 = vand.u32 %v331, 4294901760
  %333 = vmatpush.msra.mxu0 %v332
  %v334 = vand.u32 %v187, 4294901760
  %v335 = vsub.f32 %v187, %v334
  %v336 = vand.u32 %v335, 4294901760
  %v337 = vsub.f32 %v335, %v336
  %v338 = vand.u32 %v337, 4294901760
  %339 = vmatpush.msra.mxu0 %v338
  %v340 = vand.u32 %v186, 4294901760
  %341 = vmatmul.f32.gmra.mxu0 %v340
  %v342 = vpop.f32.mrf.mxu0
  %v343 = vadd.f32 %v242, %v342
  %344 = vdwg.mxu0
  %v345 = vand.u32 %v202, 4294901760
  %v346 = vsub.f32 %v202, %v345
  %347 = vmatpush.msra.mxu0 %v346
  %v348 = vand.u32 %v201, 4294901760
  %v349 = vsub.f32 %v201, %v348
  %350 = vmatpush.msra.mxu0 %v349
  %v351 = vand.u32 %v200, 4294901760
  %v352 = vsub.f32 %v200, %v351
  %353 = vmatpush.msra.mxu0 %v352
  %v354 = vand.u32 %v199, 4294901760
  %v355 = vsub.f32 %v199, %v354
  %356 = vmatpush.msra.mxu0 %v355
  %v357 = vand.u32 %v198, 4294901760
  %v358 = vsub.f32 %v198, %v357
  %359 = vmatpush.msra.mxu0 %v358
  %v360 = vand.u32 %v197, 4294901760
  %v361 = vsub.f32 %v197, %v360
  %362 = vmatpush.msra.mxu0 %v361
  %v363 = vand.u32 %v196, 4294901760
  %v364 = vsub.f32 %v196, %v363
  %365 = vmatpush.msra.mxu0 %v364
  %v366 = vand.u32 %v195, 4294901760
  %v367 = vsub.f32 %v195, %v366
  %368 = vmatpush.msra.mxu0 %v367
  %v369 = vand.u32 %v194, 4294901760
  %v370 = vsub.f32 %v194, %v369
  %371 = vmatpush.msra.mxu0 %v370
  %v372 = vand.u32 %v193, 4294901760
  %v373 = vsub.f32 %v193, %v372
  %374 = vmatpush.msra.mxu0 %v373
  %v375 = vand.u32 %v192, 4294901760
  %v376 = vsub.f32 %v192, %v375
  %377 = vmatpush.msra.mxu0 %v376
  %v378 = vand.u32 %v191, 4294901760
  %v379 = vsub.f32 %v191, %v378
  %380 = vmatpush.msra.mxu0 %v379
  %v381 = vand.u32 %v190, 4294901760
  %v382 = vsub.f32 %v190, %v381
  %383 = vmatpush.msra.mxu0 %v382
  %v384 = vand.u32 %v189, 4294901760
  %v385 = vsub.f32 %v189, %v384
  %386 = vmatpush.msra.mxu0 %v385
  %v387 = vand.u32 %v188, 4294901760
  %v388 = vsub.f32 %v188, %v387
  %389 = vmatpush.msra.mxu0 %v388
  %v390 = vand.u32 %v187, 4294901760
  %v391 = vsub.f32 %v187, %v390
  %392 = vmatpush.msra.mxu0 %v391
  %v393 = vand.u32 %v186, 4294901760
  %v394 = vsub.f32 %v186, %v393
  %395 = vmatmul.f32.gmra.mxu0 %v394
  %v396 = vpop.f32.mrf.mxu0
  %v397 = vadd.f32 %v343, %v396
  %398 = vdwg.mxu0
  %v399 = vand.u32 %v202, 4294901760
  %400 = vmatpush.msra.mxu0 %v399
  %v401 = vand.u32 %v201, 4294901760
  %402 = vmatpush.msra.mxu0 %v401
  %v403 = vand.u32 %v200, 4294901760
  %404 = vmatpush.msra.mxu0 %v403
  %v405 = vand.u32 %v199, 4294901760
  %406 = vmatpush.msra.mxu0 %v405
  %v407 = vand.u32 %v198, 4294901760
  %408 = vmatpush.msra.mxu0 %v407
  %v409 = vand.u32 %v197, 4294901760
  %410 = vmatpush.msra.mxu0 %v409
  %v411 = vand.u32 %v196, 4294901760
  %412 = vmatpush.msra.mxu0 %v411
  %v413 = vand.u32 %v195, 4294901760
  %414 = vmatpush.msra.mxu0 %v413
  %v415 = vand.u32 %v194, 4294901760
  %416 = vmatpush.msra.mxu0 %v415
  %v417 = vand.u32 %v193, 4294901760
  %418 = vmatpush.msra.mxu0 %v417
  %v419 = vand.u32 %v192, 4294901760
  %420 = vmatpush.msra.mxu0 %v419
  %v421 = vand.u32 %v191, 4294901760
  %422 = vmatpush.msra.mxu0 %v421
  %v423 = vand.u32 %v190, 4294901760
  %424 = vmatpush.msra.mxu0 %v423
  %v425 = vand.u32 %v189, 4294901760
  %426 = vmatpush.msra.mxu0 %v425
  %v427 = vand.u32 %v188, 4294901760
  %428 = vmatpush.msra.mxu0 %v427
  %v429 = vand.u32 %v187, 4294901760
  %430 = vmatpush.msra.mxu0 %v429
  %v431 = vand.u32 %v186, 4294901760
  %v432 = vsub.f32 %v186, %v431
  %v433 = vand.u32 %v432, 4294901760
  %434 = vmatmul.f32.gmra.mxu0 %v433
  %v435 = vpop.f32.mrf.mxu0
  %v436 = vadd.f32 %v397, %v435
  %437 = vdwg.mxu0
  %v438 = vand.u32 %v202, 4294901760
  %v439 = vsub.f32 %v202, %v438
  %v440 = vand.u32 %v439, 4294901760
  %441 = vmatpush.msra.mxu0 %v440
  %v442 = vand.u32 %v201, 4294901760
  %v443 = vsub.f32 %v201, %v442
  %v444 = vand.u32 %v443, 4294901760
  %445 = vmatpush.msra.mxu0 %v444
  %v446 = vand.u32 %v200, 4294901760
  %v447 = vsub.f32 %v200, %v446
  %v448 = vand.u32 %v447, 4294901760
  %449 = vmatpush.msra.mxu0 %v448
  %v450 = vand.u32 %v199, 4294901760
  %v451 = vsub.f32 %v199, %v450
  %v452 = vand.u32 %v451, 4294901760
  %453 = vmatpush.msra.mxu0 %v452
  %v454 = vand.u32 %v198, 4294901760
  %v455 = vsub.f32 %v198, %v454
  %v456 = vand.u32 %v455, 4294901760
  %457 = vmatpush.msra.mxu0 %v456
  %v458 = vand.u32 %v197, 4294901760
  %v459 = vsub.f32 %v197, %v458
  %v460 = vand.u32 %v459, 4294901760
  %461 = vmatpush.msra.mxu0 %v460
  %v462 = vand.u32 %v196, 4294901760
  %v463 = vsub.f32 %v196, %v462
  %v464 = vand.u32 %v463, 4294901760
  %465 = vmatpush.msra.mxu0 %v464
  %v466 = vand.u32 %v195, 4294901760
  %v467 = vsub.f32 %v195, %v466
  %v468 = vand.u32 %v467, 4294901760
  %469 = vmatpush.msra.mxu0 %v468
  %v470 = vand.u32 %v194, 4294901760
  %v471 = vsub.f32 %v194, %v470
  %v472 = vand.u32 %v471, 4294901760
  %473 = vmatpush.msra.mxu0 %v472
  %v474 = vand.u32 %v193, 4294901760
  %v475 = vsub.f32 %v193, %v474
  %v476 = vand.u32 %v475, 4294901760
  %477 = vmatpush.msra.mxu0 %v476
  %v478 = vand.u32 %v192, 4294901760
  %v479 = vsub.f32 %v192, %v478
  %v480 = vand.u32 %v479, 4294901760
  %481 = vmatpush.msra.mxu0 %v480
  %v482 = vand.u32 %v191, 4294901760
  %v483 = vsub.f32 %v191, %v482
  %v484 = vand.u32 %v483, 4294901760
  %485 = vmatpush.msra.mxu0 %v484
  %v486 = vand.u32 %v190, 4294901760
  %v487 = vsub.f32 %v190, %v486
  %v488 = vand.u32 %v487, 4294901760
  %489 = vmatpush.msra.mxu0 %v488
  %v490 = vand.u32 %v189, 4294901760
  %v491 = vsub.f32 %v189, %v490
  %v492 = vand.u32 %v491, 4294901760
  %493 = vmatpush.msra.mxu0 %v492
  %v494 = vand.u32 %v188, 4294901760
  %v495 = vsub.f32 %v188, %v494
  %v496 = vand.u32 %v495, 4294901760
  %497 = vmatpush.msra.mxu0 %v496
  %v498 = vand.u32 %v187, 4294901760
  %v499 = vsub.f32 %v187, %v498
  %v500 = vand.u32 %v499, 4294901760
  %501 = vmatpush.msra.mxu0 %v500
  %v502 = vand.u32 %v186, 4294901760
  %503 = vmatmul.f32.gmra.mxu0 %v502
  %v504 = vpop.f32.mrf.mxu0
  %v505 = vadd.f32 %v436, %v504
  %506 = vdwg.mxu0
  %v507 = vand.u32 %v202, 4294901760
  %508 = vmatpush.msra.mxu0 %v507
  %v509 = vand.u32 %v201, 4294901760
  %510 = vmatpush.msra.mxu0 %v509
  %v511 = vand.u32 %v200, 4294901760
  %512 = vmatpush.msra.mxu0 %v511
  %v513 = vand.u32 %v199, 4294901760
  %514 = vmatpush.msra.mxu0 %v513
  %v515 = vand.u32 %v198, 4294901760
  %516 = vmatpush.msra.mxu0 %v515
  %v517 = vand.u32 %v197, 4294901760
  %518 = vmatpush.msra.mxu0 %v517
  %v519 = vand.u32 %v196, 4294901760
  %520 = vmatpush.msra.mxu0 %v519
  %v521 = vand.u32 %v195, 4294901760
  %522 = vmatpush.msra.mxu0 %v521
  %v523 = vand.u32 %v194, 4294901760
  %524 = vmatpush.msra.mxu0 %v523
  %v525 = vand.u32 %v193, 4294901760
  %526 = vmatpush.msra.mxu0 %v525
  %v527 = vand.u32 %v192, 4294901760
  %528 = vmatpush.msra.mxu0 %v527
  %v529 = vand.u32 %v191, 4294901760
  %530 = vmatpush.msra.mxu0 %v529
  %v531 = vand.u32 %v190, 4294901760
  %532 = vmatpush.msra.mxu0 %v531
  %v533 = vand.u32 %v189, 4294901760
  %534 = vmatpush.msra.mxu0 %v533
  %v535 = vand.u32 %v188, 4294901760
  %536 = vmatpush.msra.mxu0 %v535
  %v537 = vand.u32 %v187, 4294901760
  %538 = vmatpush.msra.mxu0 %v537
  %v539 = vand.u32 %v186, 4294901760
  %540 = vmatmul.f32.gmra.mxu0 %v539
  %v541 = vpop.f32.mrf.mxu0
  %v542 = vadd.f32 %v505, %v541
  %543 = vdwg.mxu0
  %v544 = vsub.f32 %v186, %v542
  %v545 = vmul.f32 %v544, %v544
  %v546 = vand.u32 %v202, 4294901760
  %547 = vmatpush.msra.mxu0 %v546
  %v548 = vand.u32 %v201, 4294901760
  %549 = vmatpush.msra.mxu0 %v548
  %v550 = vand.u32 %v200, 4294901760
  %551 = vmatpush.msra.mxu0 %v550
  %v552 = vand.u32 %v199, 4294901760
  %553 = vmatpush.msra.mxu0 %v552
  %v554 = vand.u32 %v198, 4294901760
  %555 = vmatpush.msra.mxu0 %v554
  %v556 = vand.u32 %v197, 4294901760
  %557 = vmatpush.msra.mxu0 %v556
  %v558 = vand.u32 %v196, 4294901760
  %559 = vmatpush.msra.mxu0 %v558
  %v560 = vand.u32 %v195, 4294901760
  %561 = vmatpush.msra.mxu0 %v560
  %v562 = vand.u32 %v194, 4294901760
  %563 = vmatpush.msra.mxu0 %v562
  %v564 = vand.u32 %v193, 4294901760
  %565 = vmatpush.msra.mxu0 %v564
  %v566 = vand.u32 %v192, 4294901760
  %567 = vmatpush.msra.mxu0 %v566
  %v568 = vand.u32 %v191, 4294901760
  %569 = vmatpush.msra.mxu0 %v568
  %v570 = vand.u32 %v190, 4294901760
  %571 = vmatpush.msra.mxu0 %v570
  %v572 = vand.u32 %v189, 4294901760
  %573 = vmatpush.msra.mxu0 %v572
  %v574 = vand.u32 %v188, 4294901760
  %575 = vmatpush.msra.mxu0 %v574
  %v576 = vand.u32 %v187, 4294901760
  %577 = vmatpush.msra.mxu0 %v576
  %v578 = vand.u32 %v545, 4294901760
  %v579 = vsub.f32 %v545, %v578
  %v580 = vand.u32 %v579, 4294901760
  %v581 = vsub.f32 %v579, %v580
  %v582 = vand.u32 %v581, 4294901760
  %583 = vmatmul.f32.gmra.mxu0 %v582
  %v584 = vpop.f32.mrf.mxu0
  %v585 = vadd.f32 1e-05, %v584
  %586 = vdwg.mxu0
  %v587 = vand.u32 %v202, 4294901760
  %v588 = vsub.f32 %v202, %v587
  %v589 = vand.u32 %v588, 4294901760
  %v590 = vsub.f32 %v588, %v589
  %v591 = vand.u32 %v590, 4294901760
  %592 = vmatpush.msra.mxu0 %v591
  %v593 = vand.u32 %v201, 4294901760
  %v594 = vsub.f32 %v201, %v593
  %v595 = vand.u32 %v594, 4294901760
  %v596 = vsub.f32 %v594, %v595
  %v597 = vand.u32 %v596, 4294901760
  %598 = vmatpush.msra.mxu0 %v597
  %v599 = vand.u32 %v200, 4294901760
  %v600 = vsub.f32 %v200, %v599
  %v601 = vand.u32 %v600, 4294901760
  %v602 = vsub.f32 %v600, %v601
  %v603 = vand.u32 %v602, 4294901760
  %604 = vmatpush.msra.mxu0 %v603
  %v605 = vand.u32 %v199, 4294901760
  %v606 = vsub.f32 %v199, %v605
  %v607 = vand.u32 %v606, 4294901760
  %v608 = vsub.f32 %v606, %v607
  %v609 = vand.u32 %v608, 4294901760
  %610 = vmatpush.msra.mxu0 %v609
  %v611 = vand.u32 %v198, 4294901760
  %v612 = vsub.f32 %v198, %v611
  %v613 = vand.u32 %v612, 4294901760
  %v614 = vsub.f32 %v612, %v613
  %v615 = vand.u32 %v614, 4294901760
  %616 = vmatpush.msra.mxu0 %v615
  %v617 = vand.u32 %v197, 4294901760
  %v618 = vsub.f32 %v197, %v617
  %v619 = vand.u32 %v618, 4294901760
  %v620 = vsub.f32 %v618, %v619
  %v621 = vand.u32 %v620, 4294901760
  %622 = vmatpush.msra.mxu0 %v621
  %v623 = vand.u32 %v196, 4294901760
  %v624 = vsub.f32 %v196, %v623
  %v625 = vand.u32 %v624, 4294901760
  %v626 = vsub.f32 %v624, %v625
  %v627 = vand.u32 %v626, 4294901760
  %628 = vmatpush.msra.mxu0 %v627
  %v629 = vand.u32 %v195, 4294901760
  %v630 = vsub.f32 %v195, %v629
  %v631 = vand.u32 %v630, 4294901760
  %v632 = vsub.f32 %v630, %v631
  %v633 = vand.u32 %v632, 4294901760
  %634 = vmatpush.msra.mxu0 %v633
  %v635 = vand.u32 %v194, 4294901760
  %v636 = vsub.f32 %v194, %v635
  %v637 = vand.u32 %v636, 4294901760
  %v638 = vsub.f32 %v636, %v637
  %v639 = vand.u32 %v638, 4294901760
  %640 = vmatpush.msra.mxu0 %v639
  %v641 = vand.u32 %v193, 4294901760
  %v642 = vsub.f32 %v193, %v641
  %v643 = vand.u32 %v642, 4294901760
  %v644 = vsub.f32 %v642, %v643
  %v645 = vand.u32 %v644, 4294901760
  %646 = vmatpush.msra.mxu0 %v645
  %v647 = vand.u32 %v192, 4294901760
  %v648 = vsub.f32 %v192, %v647
  %v649 = vand.u32 %v648, 4294901760
  %v650 = vsub.f32 %v648, %v649
  %v651 = vand.u32 %v650, 4294901760
  %652 = vmatpush.msra.mxu0 %v651
  %v653 = vand.u32 %v191, 4294901760
  %v654 = vsub.f32 %v191, %v653
  %v655 = vand.u32 %v654, 4294901760
  %v656 = vsub.f32 %v654, %v655
  %v657 = vand.u32 %v656, 4294901760
  %658 = vmatpush.msra.mxu0 %v657
  %v659 = vand.u32 %v190, 4294901760
  %v660 = vsub.f32 %v190, %v659
  %v661 = vand.u32 %v660, 4294901760
  %v662 = vsub.f32 %v660, %v661
  %v663 = vand.u32 %v662, 4294901760
  %664 = vmatpush.msra.mxu0 %v663
  %v665 = vand.u32 %v189, 4294901760
  %v666 = vsub.f32 %v189, %v665
  %v667 = vand.u32 %v666, 4294901760
  %v668 = vsub.f32 %v666, %v667
  %v669 = vand.u32 %v668, 4294901760
  %670 = vmatpush.msra.mxu0 %v669
  %v671 = vand.u32 %v188, 4294901760
  %v672 = vsub.f32 %v188, %v671
  %v673 = vand.u32 %v672, 4294901760
  %v674 = vsub.f32 %v672, %v673
  %v675 = vand.u32 %v674, 4294901760
  %676 = vmatpush.msra.mxu0 %v675
  %v677 = vand.u32 %v187, 4294901760
  %v678 = vsub.f32 %v187, %v677
  %v679 = vand.u32 %v678, 4294901760
  %v680 = vsub.f32 %v678, %v679
  %v681 = vand.u32 %v680, 4294901760
  %682 = vmatpush.msra.mxu0 %v681
  %v683 = vand.u32 %v545, 4294901760
  %684 = vmatmul.f32.gmra.mxu0 %v683
  %v685 = vpop.f32.mrf.mxu0
  %v686 = vadd.f32 %v585, %v685
  %687 = vdwg.mxu0
  %v688 = vand.u32 %v202, 4294901760
  %v689 = vsub.f32 %v202, %v688
  %690 = vmatpush.msra.mxu0 %v689
  %v691 = vand.u32 %v201, 4294901760
  %v692 = vsub.f32 %v201, %v691
  %693 = vmatpush.msra.mxu0 %v692
  %v694 = vand.u32 %v200, 4294901760
  %v695 = vsub.f32 %v200, %v694
  %696 = vmatpush.msra.mxu0 %v695
  %v697 = vand.u32 %v199, 4294901760
  %v698 = vsub.f32 %v199, %v697
  %699 = vmatpush.msra.mxu0 %v698
  %v700 = vand.u32 %v198, 4294901760
  %v701 = vsub.f32 %v198, %v700
  %702 = vmatpush.msra.mxu0 %v701
  %v703 = vand.u32 %v197, 4294901760
  %v704 = vsub.f32 %v197, %v703
  %705 = vmatpush.msra.mxu0 %v704
  %v706 = vand.u32 %v196, 4294901760
  %v707 = vsub.f32 %v196, %v706
  %708 = vmatpush.msra.mxu0 %v707
  %v709 = vand.u32 %v195, 4294901760
  %v710 = vsub.f32 %v195, %v709
  %711 = vmatpush.msra.mxu0 %v710
  %v712 = vand.u32 %v194, 4294901760
  %v713 = vsub.f32 %v194, %v712
  %714 = vmatpush.msra.mxu0 %v713
  %v715 = vand.u32 %v193, 4294901760
  %v716 = vsub.f32 %v193, %v715
  %717 = vmatpush.msra.mxu0 %v716
  %v718 = vand.u32 %v192, 4294901760
  %v719 = vsub.f32 %v192, %v718
  %720 = vmatpush.msra.mxu0 %v719
  %v721 = vand.u32 %v191, 4294901760
  %v722 = vsub.f32 %v191, %v721
  %723 = vmatpush.msra.mxu0 %v722
  %v724 = vand.u32 %v190, 4294901760
  %v725 = vsub.f32 %v190, %v724
  %726 = vmatpush.msra.mxu0 %v725
  %v727 = vand.u32 %v189, 4294901760
  %v728 = vsub.f32 %v189, %v727
  %729 = vmatpush.msra.mxu0 %v728
  %v730 = vand.u32 %v188, 4294901760
  %v731 = vsub.f32 %v188, %v730
  %732 = vmatpush.msra.mxu0 %v731
  %v733 = vand.u32 %v187, 4294901760
  %v734 = vsub.f32 %v187, %v733
  %735 = vmatpush.msra.mxu0 %v734
  %v736 = vand.u32 %v545, 4294901760
  %v737 = vsub.f32 %v545, %v736
  %738 = vmatmul.f32.gmra.mxu0 %v737
  %v739 = vpop.f32.mrf.mxu0
  %v740 = vadd.f32 %v686, %v739
  %741 = vdwg.mxu0
  %v742 = vand.u32 %v202, 4294901760
  %743 = vmatpush.msra.mxu0 %v742
  %v744 = vand.u32 %v201, 4294901760
  %745 = vmatpush.msra.mxu0 %v744
  %v746 = vand.u32 %v200, 4294901760
  %747 = vmatpush.msra.mxu0 %v746
  %v748 = vand.u32 %v199, 4294901760
  %749 = vmatpush.msra.mxu0 %v748
  %v750 = vand.u32 %v198, 4294901760
  %751 = vmatpush.msra.mxu0 %v750
  %v752 = vand.u32 %v197, 4294901760
  %753 = vmatpush.msra.mxu0 %v752
  %v754 = vand.u32 %v196, 4294901760
  %755 = vmatpush.msra.mxu0 %v754
  %v756 = vand.u32 %v195, 4294901760
  %757 = vmatpush.msra.mxu0 %v756
  %v758 = vand.u32 %v194, 4294901760
  %759 = vmatpush.msra.mxu0 %v758
  %v760 = vand.u32 %v193, 4294901760
  %761 = vmatpush.msra.mxu0 %v760
  %v762 = vand.u32 %v192, 4294901760
  %763 = vmatpush.msra.mxu0 %v762
  %v764 = vand.u32 %v191, 4294901760
  %765 = vmatpush.msra.mxu0 %v764
  %v766 = vand.u32 %v190, 4294901760
  %767 = vmatpush.msra.mxu0 %v766
  %v768 = vand.u32 %v189, 4294901760
  %769 = vmatpush.msra.mxu0 %v768
  %v770 = vand.u32 %v188, 4294901760
  %771 = vmatpush.msra.mxu0 %v770
  %v772 = vand.u32 %v187, 4294901760
  %773 = vmatpush.msra.mxu0 %v772
  %v774 = vand.u32 %v545, 4294901760
  %v775 = vsub.f32 %v545, %v774
  %v776 = vand.u32 %v775, 4294901760
  %777 = vmatmul.f32.gmra.mxu0 %v776
  %v778 = vpop.f32.mrf.mxu0
  %v779 = vadd.f32 %v740, %v778
  %780 = vdwg.mxu0
  %v781 = vand.u32 %v202, 4294901760
  %v782 = vsub.f32 %v202, %v781
  %v783 = vand.u32 %v782, 4294901760
  %784 = vmatpush.msra.mxu0 %v783
  %v785 = vand.u32 %v201, 4294901760
  %v786 = vsub.f32 %v201, %v785
  %v787 = vand.u32 %v786, 4294901760
  %788 = vmatpush.msra.mxu0 %v787
  %v789 = vand.u32 %v200, 4294901760
  %v790 = vsub.f32 %v200, %v789
  %v791 = vand.u32 %v790, 4294901760
  %792 = vmatpush.msra.mxu0 %v791
  %v793 = vand.u32 %v199, 4294901760
  %v794 = vsub.f32 %v199, %v793
  %v795 = vand.u32 %v794, 4294901760
  %796 = vmatpush.msra.mxu0 %v795
  %v797 = vand.u32 %v198, 4294901760
  %v798 = vsub.f32 %v198, %v797
  %v799 = vand.u32 %v798, 4294901760
  %800 = vmatpush.msra.mxu0 %v799
  %v801 = vand.u32 %v197, 4294901760
  %v802 = vsub.f32 %v197, %v801
  %v803 = vand.u32 %v802, 4294901760
  %804 = vmatpush.msra.mxu0 %v803
  %v805 = vand.u32 %v196, 4294901760
  %v806 = vsub.f32 %v196, %v805
  %v807 = vand.u32 %v806, 4294901760
  %808 = vmatpush.msra.mxu0 %v807
  %v809 = vand.u32 %v195, 4294901760
  %v810 = vsub.f32 %v195, %v809
  %v811 = vand.u32 %v810, 4294901760
  %812 = vmatpush.msra.mxu0 %v811
  %v813 = vand.u32 %v194, 4294901760
  %v814 = vsub.f32 %v194, %v813
  %v815 = vand.u32 %v814, 4294901760
  %816 = vmatpush.msra.mxu0 %v815
  %v817 = vand.u32 %v193, 4294901760
  %v818 = vsub.f32 %v193, %v817
  %v819 = vand.u32 %v818, 4294901760
  %820 = vmatpush.msra.mxu0 %v819
  %v821 = vand.u32 %v192, 4294901760
  %v822 = vsub.f32 %v192, %v821
  %v823 = vand.u32 %v822, 4294901760
  %824 = vmatpush.msra.mxu0 %v823
  %v825 = vand.u32 %v191, 4294901760
  %v826 = vsub.f32 %v191, %v825
  %v827 = vand.u32 %v826, 4294901760
  %828 = vmatpush.msra.mxu0 %v827
  %v829 = vand.u32 %v190, 4294901760
  %v830 = vsub.f32 %v190, %v829
  %v831 = vand.u32 %v830, 4294901760
  %832 = vmatpush.msra.mxu0 %v831
  %v833 = vand.u32 %v189, 4294901760
  %v834 = vsub.f32 %v189, %v833
  %v835 = vand.u32 %v834, 4294901760
  %836 = vmatpush.msra.mxu0 %v835
  %v837 = vand.u32 %v188, 4294901760
  %v838 = vsub.f32 %v188, %v837
  %v839 = vand.u32 %v838, 4294901760
  %840 = vmatpush.msra.mxu0 %v839
  %v841 = vand.u32 %v187, 4294901760
  %v842 = vsub.f32 %v187, %v841
  %v843 = vand.u32 %v842, 4294901760
  %844 = vmatpush.msra.mxu0 %v843
  %v845 = vand.u32 %v545, 4294901760
  %846 = vmatmul.f32.gmra.mxu0 %v845
  %v847 = vpop.f32.mrf.mxu0
  %v848 = vadd.f32 %v779, %v847
  %849 = vdwg.mxu0
  %v850 = vand.u32 %v202, 4294901760
  %851 = vmatpush.msra.mxu0 %v850
  %v852 = vand.u32 %v201, 4294901760
  %853 = vmatpush.msra.mxu0 %v852
  %v854 = vand.u32 %v200, 4294901760
  %855 = vmatpush.msra.mxu0 %v854
  %v856 = vand.u32 %v199, 4294901760
  %857 = vmatpush.msra.mxu0 %v856
  %v858 = vand.u32 %v198, 4294901760
  %859 = vmatpush.msra.mxu0 %v858
  %v860 = vand.u32 %v197, 4294901760
  %861 = vmatpush.msra.mxu0 %v860
  %v862 = vand.u32 %v196, 4294901760
  %863 = vmatpush.msra.mxu0 %v862
  %v864 = vand.u32 %v195, 4294901760
  %865 = vmatpush.msra.mxu0 %v864
  %v866 = vand.u32 %v194, 4294901760
  %867 = vmatpush.msra.mxu0 %v866
  %v868 = vand.u32 %v193, 4294901760
  %869 = vmatpush.msra.mxu0 %v868
  %v870 = vand.u32 %v192, 4294901760
  %871 = vmatpush.msra.mxu0 %v870
  %v872 = vand.u32 %v191, 4294901760
  %873 = vmatpush.msra.mxu0 %v872
  %v874 = vand.u32 %v190, 4294901760
  %875 = vmatpush.msra.mxu0 %v874
  %v876 = vand.u32 %v189, 4294901760
  %877 = vmatpush.msra.mxu0 %v876
  %v878 = vand.u32 %v188, 4294901760
  %879 = vmatpush.msra.mxu0 %v878
  %v880 = vand.u32 %v187, 4294901760
  %881 = vmatpush.msra.mxu0 %v880
  %v882 = vand.u32 %v545, 4294901760
  %883 = vmatmul.f32.gmra.mxu0 %v882
  %v884 = vpop.f32.mrf.mxu0
  %v885 = vadd.f32 %v848, %v884
  %886 = vdwg.mxu0
  %v887 = vrsqrt.pop %v885
  %v888 = vmul.f32 %v887, %v885
  %v889 = vmul.f32 %v888, %v887
  %v890 = vmul.f32 0.5, %v889
  %v891 = vsub.f32 1.5, %v890
  %v892 = vmul.f32 %v887, %v891
  %vm893 = vweird.f32 %v885
  %vm894 = vweird.f32 %v887
  %vm895 = vmor %vm893, %vm894
  %v896 = vsel %vm895, %v887, %v892
  %v897 = vmul.f32 %v544, %v896
  %v898 = vld [vmem:[%s5] sm:$0x1]
  %v900 = vperm.slane %v898, 0
  %v902 = vmul.f32 %v897, %v900
  %v903 = vld [vmem:[%s6] sm:$0x1]
  %v905 = vperm.slane %v903, 0
  %v907 = vadd.f32 %v902, %v905
  %908 = vst [vmem:[%s8] sm:$0xff] %v907
  // Predicated region
  $region34: #{baseline_layer.1} parent=0 // pred_check
    _
  $region35: #{baseline_layer.1} parent=0 // pred_check_branch
    %910 = sbr.rel (0) target = $region37
  $region36: #{baseline_layer.1} parent=0 // pred_region
    _
  $region37: #{baseline_layer.1} parent=0 // pred_fallthru
    _
  // Predicated region
  $region38: #{baseline_layer.1} parent=0 // pred_check
    _
  $region39: #{baseline_layer.1} parent=0 // pred_check_branch
    %912 = sbr.rel (0) target = $region41
  $region40: #{baseline_layer.1} parent=0 // pred_region
    _
  $region41: #{baseline_layer.1} parent=0 // pred_fallthru
    _

</llo_original>
